<compile_context>
chip_gen: v7x
topology: tpu7x:2x2x1
jax: 0.10.0
libtpu: 0.0.40
codegen_flags: <defaults>
</compile_context>

<pallas_src>
import jax
import jax.numpy as jnp
from jax.experimental import pallas as pl
from jax.experimental.pallas import tpu as pltpu


def _round_up(x, m):
    return ((x + m - 1) // m) * m


def _head_attention_kernel(x_ref, wqk_ref, bias_ref, out_ref):
    """Causal self-attention for one batch tile.

    x_ref:    (BSUB, Tp, Cp)  bf16 activations (feature dim zero-padded to Cp,
                              seq dim zero-padded to Tp)
    wqk_ref:  (Cp, 2*Cp)      bf16 packed [W_query | scale * W_key], (in, out) layout
    bias_ref: (Tp, Tp)        f32 additive causal mask (0 / -1e30)
    out_ref:  (BSUB, Tp, Cp)  bf16 attention outputs
    """
    bsub, tp, cp = x_ref.shape

    # ---- QK projection: single MXU matmul over all rows of the tile --------
    x2d = x_ref[...].reshape(bsub * tp, cp)                    # bf16
    qk = jnp.dot(x2d, wqk_ref[...],
                 preferred_element_type=jnp.float32)           # (bsub*Tp, 2Cp) f32
    qk_b = qk.astype(jnp.bfloat16)                             # one cast, reused below
    q_b = qk_b[:, :cp].reshape(bsub, tp, cp)                   # 128-aligned slices
    k_b = qk_b[:, cp:].reshape(bsub, tp, cp)                   # scale already folded in
    # Reference module: values = self.query(inputs)  (bug preserved) -> V is q_b.

    # ---- attention logits, causal mask (additive bias), softmax ------------
    logits = jnp.einsum('btc,bsc->bts', q_b, k_b,
                        preferred_element_type=jnp.float32)    # (bsub, Tp, Tp) f32
    logits = logits + bias_ref[...]                            # broadcast over bsub

    m = jnp.max(logits, axis=-1, keepdims=True)
    p = jnp.exp(logits - m)
    denom = jnp.sum(p, axis=-1, keepdims=True)
    scores = (p * pl.reciprocal(denom, approx=True)).astype(jnp.bfloat16)

    # ---- weighted sum of values ---------------------------------------------
    out = jnp.einsum('bts,bsc->btc', scores, q_b,
                     preferred_element_type=jnp.float32)       # (bsub, Tp, Cp) f32 acc
    out_ref[...] = out.astype(out_ref.dtype)                   # bf16 store


def head_forward(inputs, w_query, w_key, w_value=None, *,
                 context_length, batch_tile=None):
    """Forward pass of `Head`.

    inputs:  (B, T, C)
    w_query / w_key / w_value: (C, C) in (in_features, out_features) layout,
        i.e. x @ w == nn.Linear(...)(x) with PyTorch weight w.T.
    NOTE: mirroring the reference module, values use the *query* projection;
    w_value is accepted but unused.
    """
    del w_value  # unused by the reference forward (values = query(inputs))
    B, T, C = inputs.shape
    assert T <= context_length
    scale = float(C) ** -0.5                   # keys.shape[-1] ** -0.5

    cp = _round_up(C, 128)                     # lane-dense feature dim
    tp = _round_up(T, 8)                       # sublane-dense seq dim
    # NOTE: for T < 128 the (Tp, Tp) softmax path is lane-sparse; fixing that
    # would require block-diagonal sequence packing, which costs extra logit flops.

    # ---- tile sizing: MXU M target, >=2 grid steps (v7x megacore), VMEM clamp ----
    if batch_tile is None:
        batch_tile = max(1, 512 // tp)                       # ~512 MXU rows per step
        if B >= 2:
            batch_tile = min(batch_tile, max(1, B // 2))     # >= 2 grid steps
    bsub = max(1, min(batch_tile, B))

    def _step_bytes(bs):
        x_t = bs * tp * cp * 2                               # bf16 input tile
        o_t = bs * tp * cp * 2                               # bf16 output tile
        w_t = cp * 2 * cp * 2                                # bf16 resident weight
        qk_t = bs * tp * 2 * cp * (4 + 2)                    # f32 qk + bf16 copy
        sm_t = 3 * bs * tp * tp * 4                          # logits / p / scores f32
        return 2 * (x_t + o_t) + w_t + qk_t + sm_t + tp * tp * 4

    VMEM_BUDGET = 40 * 1024 * 1024                           # safe within v7x's 64 MiB
    while bsub > 1 and _step_bytes(bsub) > VMEM_BUDGET:
        bsub //= 2

    b_pad = _round_up(B, bsub)

    # ---- bf16 pad + cast (no inflated f32 HBM copy) ----------------------------
    x = inputs.astype(jnp.bfloat16)
    if (b_pad, tp, cp) != (B, T, C):
        x = jnp.pad(x, ((0, b_pad - B), (0, tp - T), (0, cp - C)))

    def pad_w(w):
        w = w.astype(jnp.float32)
        if cp != C:
            w = jnp.pad(w, ((0, cp - C), (0, cp - C)))
        return w

    # Packed [W_query | scale * W_key]: one projection matmul, 128-aligned Q/K split,
    # softmax scale folded into K (commutes with QK^T; V stays unscaled).
    w_qk = jnp.concatenate([pad_w(w_query), pad_w(w_key) * scale],
                           axis=1).astype(jnp.bfloat16)       # (cp, 2cp) bf16

    # Additive causal bias, computed once and kept resident in VMEM.
    r = jnp.arange(tp, dtype=jnp.int32)[:, None]
    c = jnp.arange(tp, dtype=jnp.int32)[None, :]
    bias = jnp.where(c <= r, 0.0, -1e30).astype(jnp.float32)  # (tp, tp)

    out_padded = pl.pallas_call(
        _head_attention_kernel,
        out_shape=jax.ShapeDtypeStruct((b_pad, tp, cp), jnp.bfloat16),
        grid_spec=pltpu.PrefetchScalarGridSpec(
            num_scalar_prefetch=0,
            grid=(b_pad // bsub,),
            in_specs=[
                pl.BlockSpec((bsub, tp, cp), lambda b: (b, 0, 0)),
                pl.BlockSpec((cp, 2 * cp), lambda b: (0, 0)),
                pl.BlockSpec((tp, tp), lambda b: (0, 0)),
            ],
            out_specs=pl.BlockSpec((bsub, tp, cp), lambda b: (b, 0, 0)),
        ),
        compiler_params=pltpu.CompilerParams(
            dimension_semantics=("parallel",),
            vmem_limit_bytes=50 * 1024 * 1024),
    )(x, w_qk, bias)

    return out_padded[:B, :T, :C].astype(inputs.dtype)


def _reference_forward(inputs, w_query, w_key, w_value):
    """Pure-JAX f32 reference mirroring the PyTorch `Head.forward` exactly."""
    del w_value  # the PyTorch forward never uses self.value
    B, T, C = inputs.shape
    keys = inputs @ w_key
    queries = inputs @ w_query
    values = inputs @ w_query            # mirrors: values = self.query(inputs)
    logits = queries @ jnp.swapaxes(keys, -1, -2) * (keys.shape[-1] ** -0.5)
    mask = jnp.tril(jnp.ones((T, T), dtype=bool))
    logits = jnp.where(mask[None], logits, -jnp.inf)
    scores = jax.nn.softmax(logits, axis=-1)
    return scores @ values


if __name__ == "__main__":
    B = 2
    T = 8
    context_length = 16
    d_model = 32

    key = jax.random.PRNGKey(0)
    k_x, k_q, k_k, k_v = jax.random.split(key, 4)

    inputs = jax.random.normal(k_x, (B, T, d_model), jnp.float32)
    # (in, out) layout == PyTorch nn.Linear weight, transposed.
    w_query = jax.random.normal(k_q, (d_model, d_model), jnp.float32) * d_model ** -0.5
    w_key = jax.random.normal(k_k, (d_model, d_model), jnp.float32) * d_model ** -0.5
    w_value = jax.random.normal(k_v, (d_model, d_model), jnp.float32) * d_model ** -0.5

    out = head_forward(inputs, w_query, w_key, w_value,
                       context_length=context_length)
    out = jax.block_until_ready(out)
    assert out.shape == (B, T, d_model)

    ref = _reference_forward(inputs, w_query, w_key, w_value)
    # bf16 matmul operands + bf16 output + approx reciprocal -> bf16 tolerance.
    assert jnp.allclose(out, ref, atol=5e-2, rtol=5e-2), "mismatch vs reference"

    print("KERNEL_OK")
</pallas_src>

<mosaic_0001>
module attributes {stable_mosaic.version = 11 : i64} {
  func.func @_head_attention_kernel(%arg0: i32, %arg1: memref<1x8x128xbf16, #tpu.memory_space<vmem>>, %arg2: memref<128x256xbf16, #tpu.memory_space<vmem>>, %arg3: memref<8x8xf32, #tpu.memory_space<vmem>>, %arg4: memref<1x8x128xbf16, #tpu.memory_space<vmem>>) attributes {dimension_semantics = [#tpu.dimension_semantics<parallel>], iteration_bounds = array<i64: 2>, scalar_prefetch = 0 : i64, scratch_operands = 0 : i64, tpu.core_type = #tpu.core_type<tc>, window_params = [{transform_indices = @transform_0, window_bounds = array<i64: 1, 8, 128>}, {pipeline_mode = #tpu.pipeline_mode<synchronous>, transform_indices = @transform_1, window_bounds = array<i64: 128, 256>}, {pipeline_mode = #tpu.pipeline_mode<synchronous>, transform_indices = @transform_2, window_bounds = array<i64: 8, 8>}, {transform_indices = @transform_3, window_bounds = array<i64: 1, 8, 128>}]} {
    %c0 = arith.constant 0 : index
    %c0_0 = arith.constant 0 : index
    %c0_1 = arith.constant 0 : index
    %0 = vector.load %arg1[%c0, %c0_0, %c0_1] : memref<1x8x128xbf16, #tpu.memory_space<vmem>>, vector<1x8x128xbf16>
    %1 = vector.shape_cast %0 : vector<1x8x128xbf16> to vector<8x128xbf16>
    %c0_2 = arith.constant 0 : index
    %c0_3 = arith.constant 0 : index
    %2 = vector.load %arg2[%c0_2, %c0_3] : memref<128x256xbf16, #tpu.memory_space<vmem>>, vector<128x256xbf16>
    %cst = arith.constant dense<0.000000e+00> : vector<8x256xf32>
    %3 = tpu.matmul %1, %2, %cst {dimension_numbers = #tpu.dot_dimension_numbers<[1], [0], [0], [1], [0, 0, 1, 1], [], []>} : vector<8x128xbf16>, vector<128x256xbf16>, vector<8x256xf32> -> vector<8x256xf32>
    %4 = arith.truncf %3 : vector<8x256xf32> to vector<8x256xbf16>
    %5 = vector.extract_strided_slice %4 {offsets = [0, 0], sizes = [8, 128], strides = [1, 1]} : vector<8x256xbf16> to vector<8x128xbf16>
    %6 = vector.shape_cast %5 : vector<8x128xbf16> to vector<1x8x128xbf16>
    %7 = vector.extract_strided_slice %4 {offsets = [0, 128], sizes = [8, 128], strides = [1, 1]} : vector<8x256xbf16> to vector<8x128xbf16>
    %8 = vector.shape_cast %7 : vector<8x128xbf16> to vector<1x8x128xbf16>
    "tpu.trace_start"() <{level = 10 : i32, message = "btc,bsc->bts"}> : () -> ()
    %cst_4 = arith.constant dense<0.000000e+00> : vector<1x8x8xf32>
    %9 = tpu.matmul %6, %8, %cst_4 {dimension_numbers = #tpu.dot_dimension_numbers<[2], [2], [1], [1], [0, 0, 0, 1, 1, 1], [0], [0]>} : vector<1x8x128xbf16>, vector<1x8x128xbf16>, vector<1x8x8xf32> -> vector<1x8x8xf32>
    "tpu.trace_stop"() : () -> ()
    %c0_5 = arith.constant 0 : index
    %c0_6 = arith.constant 0 : index
    %10 = vector.load %arg3[%c0_5, %c0_6] : memref<8x8xf32, #tpu.memory_space<vmem>>, vector<8x8xf32>
    %11 = vector.shape_cast %10 : vector<8x8xf32> to vector<1x8x8xf32>
    %12 = arith.addf %9, %11 : vector<1x8x8xf32>
    %cst_7 = arith.constant dense<0xFF800000> : vector<1x8xf32>
    %13 = vector.multi_reduction <maximumf>, %12, %cst_7 [2] : vector<1x8x8xf32> to vector<1x8xf32>
    %14 = vector.shape_cast %13 : vector<1x8xf32> to vector<1x8x1xf32>
    %15 = vector.broadcast %14 : vector<1x8x1xf32> to vector<1x8x8xf32>
    %16 = arith.subf %12, %15 : vector<1x8x8xf32>
    %17 = math.exp %16 : vector<1x8x8xf32>
    %cst_8 = arith.constant dense<0.000000e+00> : vector<1x8xf32>
    %18 = vector.multi_reduction <add>, %17, %cst_8 [2] : vector<1x8x8xf32> to vector<1x8xf32>
    %19 = vector.shape_cast %18 : vector<1x8xf32> to vector<1x8x1xf32>
    %20 = tpu.reciprocal %19 {approx = true} : vector<1x8x1xf32> -> vector<1x8x1xf32>
    %21 = vector.broadcast %20 : vector<1x8x1xf32> to vector<1x8x8xf32>
    %22 = arith.mulf %17, %21 : vector<1x8x8xf32>
    %23 = arith.truncf %22 : vector<1x8x8xf32> to vector<1x8x8xbf16>
    "tpu.trace_start"() <{level = 10 : i32, message = "bts,bsc->btc"}> : () -> ()
    %cst_9 = arith.constant dense<0.000000e+00> : vector<1x8x128xf32>
    %24 = tpu.matmul %23, %6, %cst_9 {dimension_numbers = #tpu.dot_dimension_numbers<[2], [1], [1], [2], [0, 0, 0, 1, 1, 2], [0], [0]>} : vector<1x8x8xbf16>, vector<1x8x128xbf16>, vector<1x8x128xf32> -> vector<1x8x128xf32>
    "tpu.trace_stop"() : () -> ()
    %25 = arith.truncf %24 : vector<1x8x128xf32> to vector<1x8x128xbf16>
    %c0_10 = arith.constant 0 : index
    %c0_11 = arith.constant 0 : index
    %c0_12 = arith.constant 0 : index
    %26 = vector.load %arg4[%c0_10, %c0_11, %c0_12] : memref<1x8x128xbf16, #tpu.memory_space<vmem>>, vector<1x8x128xbf16>
    tpu.vector_store %arg4[%c0_10, %c0_11, %c0_12], %25 {strides = array<i32>} : memref<1x8x128xbf16, #tpu.memory_space<vmem>>, vector<1x8x128xbf16>,
    return
  }
  func.func @transform_0(%arg0: i32) -> (i32, i32, i32) {
    %c0_i32 = arith.constant 0 : i32
    %c0_i32_0 = arith.constant 0 : i32
    %c0_i32_1 = arith.constant 0 : i32
    return %arg0, %c0_i32, %c0_i32_0 : i32, i32, i32
  }
  func.func @transform_1(%arg0: i32) -> (i32, i32) {
    %c0_i32 = arith.constant 0 : i32
    %c0_i32_0 = arith.constant 0 : i32
    %c0_i32_1 = arith.constant 0 : i32
    return %c0_i32, %c0_i32_0 : i32, i32
  }
  func.func @transform_2(%arg0: i32) -> (i32, i32) {
    %c0_i32 = arith.constant 0 : i32
    %c0_i32_0 = arith.constant 0 : i32
    %c0_i32_1 = arith.constant 0 : i32
    return %c0_i32, %c0_i32_0 : i32, i32
  }
  func.func @transform_3(%arg0: i32) -> (i32, i32, i32) {
    %c0_i32 = arith.constant 0 : i32
    %c0_i32_0 = arith.constant 0 : i32
    %c0_i32_1 = arith.constant 0 : i32
    return %arg0, %c0_i32, %c0_i32_0 : i32, i32, i32
  }
}

</mosaic_0001>

<llo_original>
// kernel: tpu_custom_call.1
$region0: #{tpu_custom_call.1}
  #allocation0 [shape = 'u32[]', space=smem, size = 0x4, offset = 0x4, fixed_abs, tag = 'smem constant byte address 0x4 - core index']
  #allocation1 [shape = 'u32[144,128]{1,0:T(1,128)}', space=vmem, size = 0x12000, scoped, tag = 'internal scratch']
  %s0 = inlined_call_operand.hbm [shape: bf16[2,8,128], index: 0, kind: input, shape index: {}]
  %s1 = inlined_call_operand.hbm [shape: bf16[128,256], index: 1, kind: input, shape index: {}]
  %s2 = inlined_call_operand.hbm [shape: f32[8,8], index: 2, kind: input, shape index: {}]
  %s3 = inlined_call_operand.hbm [shape: bf16[2,8,128], index: 3, kind: output, shape index: {}]
  %s4 = sld [smem:[#allocation0]]
  $region57: #{tpu_custom_call.1} parent=0
    _
  %s6 = ssub.s32 1, %s4
  %s7 = scalar_select 0, %s6, %s4
  $region1: #{tpu_custom_call.1} parent=0
    #allocation2 [shape = 'u8[4096]{0}', space=vmem, size = 0x1000, scoped, tag = 'input window, operand 0']
    #allocation3 [shape = 's32[2]{0}', space=sflag, size = 0x8, scoped, tag = 'scoped memory for tpu_custom_call.1']
    #allocation4 [shape = 's32[2]{0}', space=sflag, size = 0x8, scoped, tag = 'scoped memory for tpu_custom_call.1']
    #allocation5 [shape = 'u8[65536]{0}', space=vmem, size = 0x10000, scoped, tag = 'input window, operand 1, single buffered']
    #allocation6 [shape = 's32[1]{0}', space=sflag, size = 0x4, scoped, tag = 'scoped memory for tpu_custom_call.1']
    #allocation7 [shape = 'u8[4096]{0}', space=vmem, size = 0x1000, scoped, tag = 'input window, operand 2, single buffered']
    #allocation8 [shape = 'u8[4096]{0}', space=vmem, size = 0x1000, scoped, tag = 'output window, operand 0']
    %8 = vsyncpa [#allocation3], 0
    %s9 = scalar_lea.sflag [#allocation3], 1
    %10 = vsyncpa %s9, 0
    %11 = vsyncpa [#allocation6], 0
    %12 = vsyncpa [#allocation4], 0
    %s13 = scalar_lea.sflag [#allocation4], 1
    %14 = vsyncpa %s13, 0
    loop: start=0, step=1, limit=4
    $region2: #{tpu_custom_call.1} parent=1 // loop_pre_header
      _
    $region3: #{tpu_custom_call.1} parent=1 // loop_header
      %s16 = sphi 0, %s20
      %p17 = scmp.ge.s32.totalorder %s16, 4
      %s26 = sphi 0, %s28
      %s29 = sphi 0, %s26
      %s30 = sphi 0, %s29
      %s46 = sphi 0, %s30
      %s50 = sphi 0, %s50
      %s52 = sphi 0, %s50
      %s53 = sphi 0, %s52
      %s67 = sphi 0, %s53
      %s71 = sphi 0, %s71
      %s73 = sphi 0, %s71
      %s74 = sphi 0, %s73
      %s88 = sphi 0, %s74
      %s94 = sphi 0, %s96
      %s97 = sphi 0, %s94
      %s98 = sphi 0, %s97
      %s114 = sphi 0, %s98
    $region4: #{tpu_custom_call.1} parent=1 // loop_header_branch
      %19 = sbr.rel (%p17) target = $region8
    $region5: #{tpu_custom_call.1} parent=1 // loop_body
      %s21 = ssub.s32 %s16, 1
      %s22 = ssub.s32 %s16, 2
      %s23 = sadd.s32 %s16, 1
      %s24 = ssub.s32 %s16, %s23
      %p25 = scmp.eq.s32.totalorder %s24, 0
      %s27 = sadd.s32 %s26, 1
      %s28 = scalar_select %p25, %s26, %s27
      %p31 = pneg %p25
      %p32 = scmp.eq.s32.totalorder %s16, 1
      %p33 = por %p31, %p32
      %p34 = scmp.ne.s32.totalorder %s26, %s29
      %p35 = scmp.eq.s32.totalorder %s16, 0
      %p36 = por %p34, %p35
      %p37 = scmp.ne.s32.totalorder %s26, %s29
      %p38 = scmp.eq.s32.totalorder %s21, 1
      %p39 = por %p37, %p38
      %p40 = scmp.ne.s32.totalorder %s29, %s30
      %p41 = scmp.eq.s32.totalorder %s21, 0
      %p42 = por %p40, %p41
      %p43 = scmp.ne.s32.totalorder %s29, %s30
      %p44 = scmp.eq.s32.totalorder %s22, 1
      %p45 = por %p43, %p44
      %p47 = scmp.ne.s32.totalorder %s30, %s46
      %p48 = scmp.eq.s32.totalorder %s22, 0
      %p49 = por %p47, %p48
      %s51 = sadd.s32 %s50, 1
      %p54 = scmp.eq.s32.totalorder %s16, 1
      %p55 = scmp.ne.s32.totalorder %s50, %s52
      %p56 = scmp.eq.s32.totalorder %s16, 0
      %p57 = por %p55, %p56
      %p58 = scmp.ne.s32.totalorder %s50, %s52
      %p59 = scmp.eq.s32.totalorder %s21, 1
      %p60 = por %p58, %p59
      %p61 = scmp.ne.s32.totalorder %s52, %s53
      %p62 = scmp.eq.s32.totalorder %s21, 0
      %p63 = por %p61, %p62
      %p64 = scmp.ne.s32.totalorder %s52, %s53
      %p65 = scmp.eq.s32.totalorder %s22, 1
      %p66 = por %p64, %p65
      %p68 = scmp.ne.s32.totalorder %s53, %s67
      %p69 = scmp.eq.s32.totalorder %s22, 0
      %p70 = por %p68, %p69
      %s72 = sadd.s32 %s71, 1
      %p75 = scmp.eq.s32.totalorder %s16, 1
      %p76 = scmp.ne.s32.totalorder %s71, %s73
      %p77 = scmp.eq.s32.totalorder %s16, 0
      %p78 = por %p76, %p77
      %p79 = scmp.ne.s32.totalorder %s71, %s73
      %p80 = scmp.eq.s32.totalorder %s21, 1
      %p81 = por %p79, %p80
      %p82 = scmp.ne.s32.totalorder %s73, %s74
      %p83 = scmp.eq.s32.totalorder %s21, 0
      %p84 = por %p82, %p83
      %p85 = scmp.ne.s32.totalorder %s73, %s74
      %p86 = scmp.eq.s32.totalorder %s22, 1
      %p87 = por %p85, %p86
      %p89 = scmp.ne.s32.totalorder %s74, %s88
      %p90 = scmp.eq.s32.totalorder %s22, 0
      %p91 = por %p89, %p90
      %s92 = ssub.s32 %s16, %s23
      %p93 = scmp.eq.s32.totalorder %s92, 0
      %s95 = sadd.s32 %s94, 1
      %s96 = scalar_select %p93, %s94, %s95
      %p99 = pneg %p93
      %p100 = scmp.eq.s32.totalorder %s16, 1
      %p101 = por %p99, %p100
      %p102 = scmp.ne.s32.totalorder %s94, %s97
      %p103 = scmp.eq.s32.totalorder %s16, 0
      %p104 = por %p102, %p103
      %p105 = scmp.ne.s32.totalorder %s94, %s97
      %p106 = scmp.eq.s32.totalorder %s21, 1
      %p107 = por %p105, %p106
      %p108 = scmp.ne.s32.totalorder %s97, %s98
      %p109 = scmp.eq.s32.totalorder %s21, 0
      %p110 = por %p108, %p109
      %p111 = scmp.ne.s32.totalorder %s97, %s98
      %p112 = scmp.eq.s32.totalorder %s22, 1
      %p113 = por %p111, %p112
      %p115 = scmp.ne.s32.totalorder %s98, %s114
      %p116 = scmp.eq.s32.totalorder %s22, 0
      %p117 = por %p115, %p116
      %p118 = scmp.le.s32.totalorder 1, %s16
      %p119 = scmp.lt.s32.totalorder %s16, 3
      %p120 = pnand %p118, %p119
      %p121 = pneg %p120
      // Predicated region
      $region9: #{tpu_custom_call.1} parent=5 // pred_check
        _
      $region10: #{tpu_custom_call.1} parent=5 // pred_check_branch
        %123 = sbr.rel (%p120) target = $region12
      $region11: #{tpu_custom_call.1} parent=5 // pred_region
        %s124 = ssub.s32 %s16, 1
        // Predicated region
        $region13: #{tpu_custom_call.1} parent=11 // pred_check
          %p125 = pneg %p63
        $region14: #{tpu_custom_call.1} parent=11 // pred_check_branch
          %127 = sbr.rel (%p125) target = $region16
        $region15: #{tpu_custom_call.1} parent=11 // pred_region
          %s129 = ssub.s32 2048, 2048
          %130 = vsyncadd [#allocation6], %s129
          %s131 = sshll.u32 [#allocation5], 4
          %s132 = int_to_ptr.vmem [resolvable:$true] %s131
          %137 = dma.hbm_to_vmem [thread:$0]  %s1, 2048, %s132, [#allocation6], 128, 128, 8
        $region16: #{tpu_custom_call.1} parent=11 // pred_fallthru
          _
        // Predicated region
        $region17: #{tpu_custom_call.1} parent=11 // pred_check
          %p138 = pneg %p84
        $region18: #{tpu_custom_call.1} parent=11 // pred_check_branch
          %140 = sbr.rel (%p138) target = $region20
        $region19: #{tpu_custom_call.1} parent=11 // pred_region
          %s142 = ssub.s32 128, 128
          %143 = vsyncadd [#allocation6], %s142
          %s145 = sshll.u32 [#allocation7], 4
          %s146 = int_to_ptr.vmem [resolvable:$true] %s145
          %148 = dma.hbm_to_vmem [thread:$0]  %s2, 128, %s146, [#allocation6]
        $region20: #{tpu_custom_call.1} parent=11 // pred_fallthru
          _
      $region12: #{tpu_custom_call.1} parent=5 // pred_fallthru
        _
      %p149 = scmp.lt.s32.totalorder %s16, 2
      // Predicated region
      $region21: #{tpu_custom_call.1} parent=5 // pred_check
        %p150 = pneg %p149
      $region22: #{tpu_custom_call.1} parent=5 // pred_check_branch
        %152 = sbr.rel (%p150) target = $region24
      $region23: #{tpu_custom_call.1} parent=5 // pred_region
        // Predicated region
        $region25: #{tpu_custom_call.1} parent=23 // pred_check
          %p153 = pneg %p36
        $region26: #{tpu_custom_call.1} parent=23 // pred_check_branch
          %155 = sbr.rel (%p153) target = $region28
        $region27: #{tpu_custom_call.1} parent=23 // pred_region
          %s156 = sand.u32 %s26, 1
          %s157 = scalar_lea.sflag [#allocation3], %s156
          %s158 = sand.u32 %s26, 1
          %s159 = smul.addr %s158, 4
          %s160 = scalar_lea.vmem [#allocation2], %s159
          %s162 = ssub.s32 64, 64
          %163 = vsyncadd %s157, %s162
          %s164 = smul.addr %s16, 64
          %s165 = scalar_lea.hbm %s0, %s164
          %s167 = sshll.u32 %s160, 4
          %s168 = int_to_ptr.vmem [resolvable:$true] %s167
          %170 = dma.hbm_to_vmem [thread:$0]  %s165, 64, %s168, %s157
        $region28: #{tpu_custom_call.1} parent=23 // pred_fallthru
          _
      $region24: #{tpu_custom_call.1} parent=5 // pred_fallthru
        _
      %p171 = scmp.le.s32.totalorder 1, %s16
      %p172 = scmp.lt.s32.totalorder %s16, 3
      %p173 = pnand %p171, %p172
      %p174 = pneg %p173
      // Predicated region
      $region29: #{tpu_custom_call.1} parent=5 // pred_check
        _
      $region30: #{tpu_custom_call.1} parent=5 // pred_check_branch
        %176 = sbr.rel (%p173) target = $region32
      $region31: #{tpu_custom_call.1} parent=5 // pred_region
        %s177 = ssub.s32 %s16, 1
        %s178 = sand.u32 %s29, 1
        %s179 = scalar_lea.sflag [#allocation3], %s178
        %s180 = sand.u32 %s29, 1
        %s181 = smul.addr %s180, 4
        %s182 = scalar_lea.vmem [#allocation2], %s181
        // Predicated region
        $region33: #{tpu_custom_call.1} parent=31 // pred_check
          %p183 = pneg %p42
        $region34: #{tpu_custom_call.1} parent=31 // pred_check_branch
          %185 = sbr.rel (%p183) target = $region36
        $region35: #{tpu_custom_call.1} parent=31 // pred_region
          %186 = dma.done %s179, 64
        $region36: #{tpu_custom_call.1} parent=31 // pred_fallthru
          _
        // Predicated region
        $region37: #{tpu_custom_call.1} parent=31 // pred_check
          %p187 = pneg %p63
        $region38: #{tpu_custom_call.1} parent=31 // pred_check_branch
          %189 = sbr.rel (%p187) target = $region40
        $region39: #{tpu_custom_call.1} parent=31 // pred_region
          %190 = dma.done [#allocation6], 2048
        $region40: #{tpu_custom_call.1} parent=31 // pred_fallthru
          _
        // Predicated region
        $region41: #{tpu_custom_call.1} parent=31 // pred_check
          %p191 = pneg %p84
        $region42: #{tpu_custom_call.1} parent=31 // pred_check_branch
          %193 = sbr.rel (%p191) target = $region44
        $region43: #{tpu_custom_call.1} parent=31 // pred_region
          %194 = dma.done [#allocation6], 128
        $region44: #{tpu_custom_call.1} parent=31 // pred_fallthru
          _
        %s195 = sand.u32 %s29, 1
        %s196 = scalar_lea.sflag [#allocation3], %s195
        %s197 = sand.u32 %s29, 1
        %s198 = smul.addr %s197, 4
        %s199 = scalar_lea.vmem [#allocation2], %s198
        %p200 = pneg %p42
        %p201 = pneg %p39
        %p202 = pneg %p63
        %p203 = pneg %p60
        %p204 = pneg %p84
        %p205 = pneg %p81
        %p206 = pneg %p110
        %p207 = pneg %p107
        %s208 = sand.u32 %s97, 1
        %s209 = scalar_lea.sflag [#allocation4], %s208
        %s210 = sand.u32 %s97, 1
        %s211 = smul.addr %s210, 4
        %s212 = scalar_lea.vmem [#allocation8], %s211
        %v214 = vld [vmem:[%s182] sm:$0xf]
        %v215 = vld [vmem:[#allocation5] sm:$0xff]
        %v216 = vld [vmem:[#allocation5 + $0x8] sm:$0xff]
        %v217 = vld [vmem:[#allocation5 + $0x10] sm:$0xff]
        %v218 = vld [vmem:[#allocation5 + $0x18] sm:$0xff]
        %v219 = vld [vmem:[#allocation5 + $0x20] sm:$0xff]
        %v220 = vld [vmem:[#allocation5 + $0x28] sm:$0xff]
        %v221 = vld [vmem:[#allocation5 + $0x30] sm:$0xff]
        %v222 = vld [vmem:[#allocation5 + $0x38] sm:$0xff]
        %v223 = vld [vmem:[#allocation5 + $0x40] sm:$0xff]
        %v224 = vld [vmem:[#allocation5 + $0x48] sm:$0xff]
        %v225 = vld [vmem:[#allocation5 + $0x50] sm:$0xff]
        %v226 = vld [vmem:[#allocation5 + $0x58] sm:$0xff]
        %v227 = vld [vmem:[#allocation5 + $0x60] sm:$0xff]
        %v228 = vld [vmem:[#allocation5 + $0x68] sm:$0xff]
        %v229 = vld [vmem:[#allocation5 + $0x70] sm:$0xff]
        %v230 = vld [vmem:[#allocation5 + $0x78] sm:$0xff]
        %v247 = vunpack.c.l.b16 %v215
        %v248 = vunpack.c.h.b16 %v215
        %v249 = vunpack.c.l.b16 %v216
        %v250 = vunpack.c.h.b16 %v216
        %v251 = vunpack.c.l.b16 %v217
        %v252 = vunpack.c.h.b16 %v217
        %v253 = vunpack.c.l.b16 %v218
        %v254 = vunpack.c.h.b16 %v218
        %v255 = vunpack.c.l.b16 %v219
        %v256 = vunpack.c.h.b16 %v219
        %v257 = vunpack.c.l.b16 %v220
        %v258 = vunpack.c.h.b16 %v220
        %v259 = vunpack.c.l.b16 %v221
        %v260 = vunpack.c.h.b16 %v221
        %v261 = vunpack.c.l.b16 %v222
        %v262 = vunpack.c.h.b16 %v222
        %v263 = vunpack.c.l.b16 %v223
        %v264 = vunpack.c.h.b16 %v223
        %v265 = vunpack.c.l.b16 %v224
        %v266 = vunpack.c.h.b16 %v224
        %v267 = vunpack.c.l.b16 %v225
        %v268 = vunpack.c.h.b16 %v225
        %v269 = vunpack.c.l.b16 %v226
        %v270 = vunpack.c.h.b16 %v226
        %v271 = vunpack.c.l.b16 %v227
        %v272 = vunpack.c.h.b16 %v227
        %v273 = vunpack.c.l.b16 %v228
        %v274 = vunpack.c.h.b16 %v228
        %v275 = vunpack.c.l.b16 %v229
        %v276 = vunpack.c.h.b16 %v229
        %v277 = vunpack.c.l.b16 %v230
        %v278 = vunpack.c.h.b16 %v230
        %v279 = vpack.c.b16 %v249, %v247
        %v280 = vpack.c.b16 %v250, %v248
        %v281 = vpack.c.b16 %v253, %v251
        %v282 = vpack.c.b16 %v254, %v252
        %v283 = vpack.c.b16 %v257, %v255
        %v284 = vpack.c.b16 %v258, %v256
        %v285 = vpack.c.b16 %v261, %v259
        %v286 = vpack.c.b16 %v262, %v260
        %v287 = vpack.c.b16 %v265, %v263
        %v288 = vpack.c.b16 %v266, %v264
        %v289 = vpack.c.b16 %v269, %v267
        %v290 = vpack.c.b16 %v270, %v268
        %v291 = vpack.c.b16 %v273, %v271
        %v292 = vpack.c.b16 %v274, %v272
        %v293 = vpack.c.b16 %v277, %v275
        %v294 = vpack.c.b16 %v278, %v276
        %311 = vmatprep.subr.bf16.mxu0 %v280
        %312 = vmatpush1.bf16.msra.mxu0 %v279
        %313 = vmatprep.subr.bf16.mxu0 %v282
        %314 = vmatpush1.bf16.msra.mxu0 %v281
        %315 = vmatprep.subr.bf16.mxu0 %v284
        %316 = vmatpush1.bf16.msra.mxu0 %v283
        %317 = vmatprep.subr.bf16.mxu0 %v286
        %318 = vmatpush1.bf16.msra.mxu0 %v285
        %319 = vmatprep.subr.bf16.mxu0 %v288
        %320 = vmatpush1.bf16.msra.mxu0 %v287
        %321 = vmatprep.subr.bf16.mxu0 %v290
        %322 = vmatpush1.bf16.msra.mxu0 %v289
        %323 = vmatprep.subr.bf16.mxu0 %v292
        %324 = vmatpush1.bf16.msra.mxu0 %v291
        %325 = vmatprep.subr.bf16.mxu0 %v294
        %326 = vmatpush1.bf16.msra.mxu0 %v293
        %327 = vmatprep.subr.bf16.mxu0 0
        %328 = vmatpush1.bf16.msra.mxu0 0
        %329 = vmatprep.subr.bf16.mxu0 0
        %330 = vmatpush1.bf16.msra.mxu0 0
        %331 = vmatprep.subr.bf16.mxu0 0
        %332 = vmatpush1.bf16.msra.mxu0 0
        %333 = vmatprep.subr.bf16.mxu0 0
        %334 = vmatpush1.bf16.msra.mxu0 0
        %335 = vmatprep.subr.bf16.mxu0 0
        %336 = vmatpush1.bf16.msra.mxu0 0
        %337 = vmatprep.subr.bf16.mxu0 0
        %338 = vmatpush1.bf16.msra.mxu0 0
        %339 = vmatprep.subr.bf16.mxu0 0
        %340 = vmatpush1.bf16.msra.mxu0 0
        %341 = vmatprep.subr.bf16.mxu0 0
        %342 = vmatpush1.bf16.msra.mxu0 0
        %343 = vmatprep.mubr.bf16.mxu0 0
        %344 = vmatmul.mubr.bf16.gmra.mrb[0].mxu0 %v214
        %v345 = vpop.f32.mrb[0].mxu0
        %v346 = vadd.f32 0.0, %v345
        %v347 = vpop.f32.mrb[0].mxu0
        %v348 = vadd.f32 0.0, %v347
        %v349 = vpop.f32.mrb[0].mxu0
        %v350 = vpop.f32.mrb[0].mxu0
        %351 = vdwg.mxu0
        %v352 = vpack.c.bf16 %v346, %v346
        %v353 = vpack.c.bf16 %v348, %v348
        %v354 = vld [vmem:[#allocation7] sm:$0xff]
        %355 = vmatprep.subr.bf16.mxu0 0
        %356 = vmatpush1.bf16.xpose.msra.mxu0 %v353
        %357 = vmatprep.subr.bf16.mxu0 0
        %358 = vmatpush1.bf16.xpose.msra.mxu0 0
        %359 = vmatprep.subr.bf16.mxu0 0
        %360 = vmatpush1.bf16.xpose.msra.mxu0 0
        %361 = vmatprep.subr.bf16.mxu0 0
        %362 = vmatpush1.bf16.xpose.msra.mxu0 0
        %363 = vmatprep.subr.bf16.mxu0 0
        %364 = vmatpush1.bf16.xpose.msra.mxu0 0
        %365 = vmatprep.subr.bf16.mxu0 0
        %366 = vmatpush1.bf16.xpose.msra.mxu0 0
        %367 = vmatprep.subr.bf16.mxu0 0
        %368 = vmatpush1.bf16.xpose.msra.mxu0 0
        %369 = vmatprep.subr.bf16.mxu0 0
        %370 = vmatpush1.bf16.xpose.msra.mxu0 0
        %371 = vmatprep.subr.bf16.mxu0 0
        %372 = vmatpush1.bf16.xpose.msra.mxu0 0
        %373 = vmatprep.subr.bf16.mxu0 0
        %374 = vmatpush1.bf16.xpose.msra.mxu0 0
        %375 = vmatprep.subr.bf16.mxu0 0
        %376 = vmatpush1.bf16.xpose.msra.mxu0 0
        %377 = vmatprep.subr.bf16.mxu0 0
        %378 = vmatpush1.bf16.xpose.msra.mxu0 0
        %379 = vmatprep.subr.bf16.mxu0 0
        %380 = vmatpush1.bf16.xpose.msra.mxu0 0
        %381 = vmatprep.subr.bf16.mxu0 0
        %382 = vmatpush1.bf16.xpose.msra.mxu0 0
        %383 = vmatprep.subr.bf16.mxu0 0
        %384 = vmatpush1.bf16.xpose.msra.mxu0 0
        %385 = vmatprep.subr.bf16.mxu0 0
        %386 = vmatpush1.bf16.xpose.msra.mxu0 0
        %387 = vmatprep.mubr.bf16.mxu0 0
        %388 = vmatmul.mubr.bf16.gmra.mrb[0].mxu0 %v352
        %v389 = vpop.f32.mrb[0].mxu0
        %v390 = vadd.f32 %v354, %v389
        %v391 = vpop.f32.mrb[0].mxu0
        %v392 = vpop.f32.mrb[0].mxu0
        %v393 = vpop.f32.mrb[0].mxu0
        %394 = vdwg.mxu0
        %vm395 = vcmask 64512
        %v396 = vsel %vm395, %v390, -inf
        %397 = vmax.xlane.f32.xlu0 %v396
        %v398 = vpop.xlane.xlu0 %397
        %v399 = vsub.f32 %v390, %v398
        %v400 = vmul.f32 %v399, 1.442695
        %v401 = vpow.pop %v400
        %v402 = vsel %vm395, %v401, 0.0
        %403 = vadd.xlane.f32.xlu0 %v402
        %v404 = vpop.xlane.xlu0 %403
        %v405 = vrcp.pop %v404
        %v406 = vmul.f32 %v401, %v405
        %v407 = vpack.c.bf16 %v406, %v406
        %v409 = vsel %vm395, %v407, 0
        %vm411 = vcmask 1043456
        %v413 = vsel %vm411, %v352, 0
        %415 = vmatprep.subr.bf16.mxu0 0
        %416 = vmatpush1.bf16.msra.mxu0 %v413
        %417 = vmatprep.subr.bf16.mxu0 0
        %418 = vmatpush1.bf16.msra.mxu0 0
        %419 = vmatprep.subr.bf16.mxu0 0
        %420 = vmatpush1.bf16.msra.mxu0 0
        %421 = vmatprep.subr.bf16.mxu0 0
        %422 = vmatpush1.bf16.msra.mxu0 0
        %423 = vmatprep.subr.bf16.mxu0 0
        %424 = vmatpush1.bf16.msra.mxu0 0
        %425 = vmatprep.subr.bf16.mxu0 0
        %426 = vmatpush1.bf16.msra.mxu0 0
        %427 = vmatprep.subr.bf16.mxu0 0
        %428 = vmatpush1.bf16.msra.mxu0 0
        %429 = vmatprep.subr.bf16.mxu0 0
        %430 = vmatpush1.bf16.msra.mxu0 0
        %431 = vmatprep.subr.bf16.mxu0 0
        %432 = vmatpush1.bf16.msra.mxu0 0
        %433 = vmatprep.subr.bf16.mxu0 0
        %434 = vmatpush1.bf16.msra.mxu0 0
        %435 = vmatprep.subr.bf16.mxu0 0
        %436 = vmatpush1.bf16.msra.mxu0 0
        %437 = vmatprep.subr.bf16.mxu0 0
        %438 = vmatpush1.bf16.msra.mxu0 0
        %439 = vmatprep.subr.bf16.mxu0 0
        %440 = vmatpush1.bf16.msra.mxu0 0
        %441 = vmatprep.subr.bf16.mxu0 0
        %442 = vmatpush1.bf16.msra.mxu0 0
        %443 = vmatprep.subr.bf16.mxu0 0
        %444 = vmatpush1.bf16.msra.mxu0 0
        %445 = vmatprep.subr.bf16.mxu0 0
        %446 = vmatpush1.bf16.msra.mxu0 0
        %447 = vmatprep.mubr.bf16.mxu0 0
        %448 = vmatmul.mubr.bf16.gmra.mrb[0].mxu0 %v409
        %v449 = vpop.f32.mrb[0].mxu0
        %v450 = vadd.f32 0.0, %v449
        %v451 = vpop.f32.mrb[0].mxu0
        %v452 = vpop.f32.mrb[0].mxu0
        %v453 = vpop.f32.mrb[0].mxu0
        %454 = vdwg.mxu0
        %v455 = vpack.c.bf16 %v450, %v450
        %456 = vst [vmem:[%s212] sm:$0xf] %v455
        %s457 = sand.u32 %s97, 1
        %s458 = scalar_lea.sflag [#allocation4], %s457
        %s459 = sand.u32 %s97, 1
        %s460 = smul.addr %s459, 4
        %s461 = scalar_lea.vmem [#allocation8], %s460
        // Predicated region
        $region45: #{tpu_custom_call.1} parent=31 // pred_check
          %p462 = pneg %p107
        $region46: #{tpu_custom_call.1} parent=31 // pred_check_branch
          %464 = sbr.rel (%p462) target = $region48
        $region47: #{tpu_custom_call.1} parent=31 // pred_region
          %s466 = ssub.s32 64, 64
          %467 = vsyncadd %s458, %s466
          %s468 = smul.addr %s21, 64
          %s469 = scalar_lea.hbm %s3, %s468
          %s471 = sshll.u32 %s461, 4
          %s472 = int_to_ptr.vmem [resolvable:$true] %s471
          %474 = dma.vmem_to_hbm [thread:$0]  %s472, 64, %s469, %s458
        $region48: #{tpu_custom_call.1} parent=31 // pred_fallthru
          _
      $region32: #{tpu_custom_call.1} parent=5 // pred_fallthru
        _
      %p475 = scmp.le.s32.totalorder 2, %s16
      // Predicated region
      $region49: #{tpu_custom_call.1} parent=5 // pred_check
        %p476 = pneg %p475
      $region50: #{tpu_custom_call.1} parent=5 // pred_check_branch
        %478 = sbr.rel (%p476) target = $region52
      $region51: #{tpu_custom_call.1} parent=5 // pred_region
        %s479 = ssub.s32 %s16, 2
        // Predicated region
        $region53: #{tpu_custom_call.1} parent=51 // pred_check
          %p480 = pneg %p113
        $region54: #{tpu_custom_call.1} parent=51 // pred_check_branch
          %482 = sbr.rel (%p480) target = $region56
        $region55: #{tpu_custom_call.1} parent=51 // pred_region
          %s483 = sand.u32 %s98, 1
          %s484 = scalar_lea.sflag [#allocation4], %s483
          %s485 = sand.u32 %s98, 1
          %s486 = smul.addr %s485, 4
          %s487 = scalar_lea.vmem [#allocation8], %s486
          %488 = dma.done %s484, 64
        $region56: #{tpu_custom_call.1} parent=51 // pred_fallthru
          _
      $region52: #{tpu_custom_call.1} parent=5 // pred_fallthru
        _
    $region6: #{tpu_custom_call.1} parent=1 // loop_footer
      %s20 = sadd.s32 1, %s16
    $region7: #{tpu_custom_call.1} parent=1 // loop_footer_branch
      %15 = sbr.rel target = $region3
    $region8: #{tpu_custom_call.1} parent=1 // loop_exit
      _
    %489 = vsyncpa [#allocation3], 1
    %s490 = scalar_lea.sflag [#allocation3], 1
    %491 = vsyncpa %s490, 1
    %492 = vsyncpa [#allocation6], 1
    %493 = vsyncpa [#allocation4], 1
    %s494 = scalar_lea.sflag [#allocation4], 1
    %495 = vsyncpa %s494, 1

</llo_original>
